<compile_context>
chip_gen: v5e
topology: v5e:2x2
jax: 0.10.0
libtpu: 0.0.40
codegen_flags: <defaults>
</compile_context>

<pallas_src>
import jax
import jax.numpy as jnp
from jax.experimental import pallas as pl
from jax.experimental.pallas import tpu as pltpu

_LANE = 128
_TARGET_BLOCK_BYTES = 1 << 20      # ~1 MiB per block (safe on v7x's 64 MiB VMEM)
_MIN_PALLAS_BYTES = 256 * 1024     # below this, plain XLA fusion wins


def _sublane_multiple(dtype) -> int:
    itemsize = jnp.dtype(dtype).itemsize
    if itemsize >= 4:
        return 8
    if itemsize == 2:
        return 16
    return 32


def make_residual(fn, *, in_place: bool = False):
    """Returns a callable computing fn(x) + x with fn fused in a Pallas kernel."""

    def residual_kernel(x_ref, o_ref):
        x = x_ref[...]
        # One explicit upcast per tile for low-precision floats: the elementwise
        # fn + add then run on the f32 VPU/EUP path (v5e has no bf16 VPU/EUP),
        # and we cast back on store.
        if x.dtype.itemsize < 4 and jnp.issubdtype(x.dtype, jnp.floating):
            x = x.astype(jnp.float32)
        o_ref[...] = (fn(x) + x).astype(o_ref.dtype)

    def apply(x, *, force_pallas=False, tile_rows=None):
        orig_shape = x.shape
        total = x.size
        nbytes = total * jnp.dtype(x.dtype).itemsize

        # Tiny or lane-ragged activations: let XLA fuse fn(x)+x directly.
        if total % _LANE != 0 or (nbytes < _MIN_PALLAS_BYTES and not force_pallas):
            return fn(x) + x

        # Lane-dense 2-D slab: last dim a multiple of 128 -> unmasked stores.
        # Elementwise op is layout-agnostic, so this reshape is exact.
        cols = next(c for c in (512, 1024, 2048, 256, _LANE) if total % c == 0)
        rows = total // cols
        x2 = x.reshape(rows, cols)

        # Row tile: ~1 MiB per block, aligned to the packed-sublane multiple.
        sub = _sublane_multiple(x.dtype)
        if tile_rows is None:
            tile_rows = _TARGET_BLOCK_BYTES // (cols * jnp.dtype(x.dtype).itemsize)
        tile_rows = max(sub, (min(int(tile_rows), rows) // sub) * sub)
        if rows < sub:
            tile_rows = rows                      # full-extent block is legal
        grid = (pl.cdiv(rows, tile_rows),)        # ragged tail handled by masking

        cost = pl.CostEstimate(
            flops=10 * total,                     # rough: elementwise fn + add
            transcendentals=total,
            bytes_accessed=2 * nbytes,            # read x + write out
        )

        out2 = pl.pallas_call(
            residual_kernel,
            out_shape=jax.ShapeDtypeStruct(x2.shape, x.dtype),
            grid=grid,
            in_specs=[pl.BlockSpec((tile_rows, cols), lambda i: (i, 0))],
            out_specs=pl.BlockSpec((tile_rows, cols), lambda i: (i, 0)),
            compiler_params=pltpu.CompilerParams(
                dimension_semantics=("parallel",),
            ),
            cost_estimate=cost,
            # In-place residual (only a true win if x is donated at the jit
            # boundary; otherwise XLA inserts a copy), hence opt-in.
            input_output_aliases={0: 0} if in_place else {},
        )(x2)

        return out2.reshape(orig_shape)

    return apply


if __name__ == "__main__":
    key = jax.random.PRNGKey(0)
    fn = jax.nn.gelu  # activation used inside ConvMixer residual blocks
    residual = make_residual(fn)

    k1, k2, k3 = jax.random.split(key, 3)
    # Small NCHW inputs consistent with ConvMixer feature maps.
    x_small = jax.random.normal(k1, (2, 4, 16, 16), dtype=jnp.float32)
    x_multi = jax.random.normal(k2, (3, 40, 16, 16), dtype=jnp.float32)
    x_bf16 = jax.random.normal(k3, (2, 4, 16, 16)).astype(jnp.bfloat16)

    # force_pallas=True so the kernel path itself is exercised at tiny sizes.
    y_small = jax.block_until_ready(residual(x_small, force_pallas=True))
    # Multi-step grid with a ragged tail block (60 rows, 16-row tiles).
    y_multi = jax.block_until_ready(
        residual(x_multi, force_pallas=True, tile_rows=16))
    # Low-precision path (in-kernel f32 upcast, cast back on store).
    y_bf16 = jax.block_until_ready(residual(x_bf16, force_pallas=True))

    for x, y in ((x_small, y_small), (x_multi, y_multi)):
        y_ref = fn(x) + x
        assert y.shape == x.shape and y.dtype == x.dtype
        assert jnp.allclose(y, y_ref, atol=1e-6, rtol=1e-6), "mismatch vs reference"

    y_bf16_ref = (fn(x_bf16.astype(jnp.float32))
                  + x_bf16.astype(jnp.float32)).astype(jnp.bfloat16)
    assert y_bf16.shape == x_bf16.shape and y_bf16.dtype == x_bf16.dtype
    assert jnp.allclose(y_bf16.astype(jnp.float32),
                        y_bf16_ref.astype(jnp.float32),
                        atol=5e-2, rtol=5e-2), "bf16 mismatch vs reference"

    print("KERNEL_OK")
</pallas_src>

<mosaic_0001>
module attributes {stable_mosaic.version = 11 : i64} {
  func.func @residual_kernel(%arg0: i32, %arg1: memref<4x512xf32, #tpu.memory_space<vmem>>, %arg2: memref<4x512xf32, #tpu.memory_space<vmem>>) attributes {dimension_semantics = [#tpu.dimension_semantics<parallel>], iteration_bounds = array<i64: 1>, scalar_prefetch = 0 : i64, scratch_operands = 0 : i64, tpu.core_type = #tpu.core_type<tc>, window_params = [{transform_indices = @transform_0, window_bounds = array<i64: 4, 512>}, {transform_indices = @transform_1, window_bounds = array<i64: 4, 512>}]} {
    %c0 = arith.constant 0 : index
    %c0_0 = arith.constant 0 : index
    %0 = vector.load %arg1[%c0, %c0_0] : memref<4x512xf32, #tpu.memory_space<vmem>>, vector<4x512xf32>
    %1 = arith.mulf %0, %0 : vector<4x512xf32>
    %2 = arith.mulf %0, %1 : vector<4x512xf32>
    %cst = arith.constant 4.471500e-02 : f32
    %3 = vector.broadcast %cst : f32 to vector<4x512xf32>
    %4 = arith.mulf %3, %2 : vector<4x512xf32>
    %5 = arith.addf %0, %4 : vector<4x512xf32>
    %cst_1 = arith.constant 0.797884583 : f32
    %6 = vector.broadcast %cst_1 : f32 to vector<4x512xf32>
    %7 = arith.mulf %6, %5 : vector<4x512xf32>
    %8 = math.tanh %7 : vector<4x512xf32>
    %cst_2 = arith.constant 1.000000e+00 : f32
    %9 = vector.broadcast %cst_2 : f32 to vector<4x512xf32>
    %10 = arith.addf %9, %8 : vector<4x512xf32>
    %cst_3 = arith.constant 5.000000e-01 : f32
    %11 = vector.broadcast %cst_3 : f32 to vector<4x512xf32>
    %12 = arith.mulf %11, %10 : vector<4x512xf32>
    %13 = arith.mulf %0, %12 : vector<4x512xf32>
    %14 = arith.addf %13, %0 : vector<4x512xf32>
    %c0_4 = arith.constant 0 : index
    %c0_5 = arith.constant 0 : index
    %15 = vector.load %arg2[%c0_4, %c0_5] : memref<4x512xf32, #tpu.memory_space<vmem>>, vector<4x512xf32>
    tpu.vector_store %arg2[%c0_4, %c0_5], %14 {strides = array<i32>} : memref<4x512xf32, #tpu.memory_space<vmem>>, vector<4x512xf32>,
    return
  }
  func.func @transform_0(%arg0: i32) -> (i32, i32) {
    %c0_i32 = arith.constant 0 : i32
    %c0_i32_0 = arith.constant 0 : i32
    return %arg0, %c0_i32 : i32, i32
  }
  func.func @transform_1(%arg0: i32) -> (i32, i32) {
    %c0_i32 = arith.constant 0 : i32
    %c0_i32_0 = arith.constant 0 : i32
    return %arg0, %c0_i32 : i32, i32
  }
}

</mosaic_0001>

<llo_original>
// kernel: tpu_custom_call.1
$region0: #{tpu_custom_call.1}
  #allocation0 [shape = 'u32[]', space=smem, size = 0x4, offset = 0x4, fixed_abs, tag = 'smem constant byte address 0x4 - core index']
  #allocation1 [shape = 'u32[72,128]{1,0:T(1,128)}', space=vmem, size = 0x9000, scoped, tag = 'internal scratch']
  %s0 = inlined_call_operand.hbm [shape: f32[4,512], index: 0, kind: input, shape index: {}]
  %s1 = inlined_call_operand.hbm [shape: f32[4,512], index: 1, kind: output, shape index: {}]
  %s2 = sld [smem:[#allocation0]]
  $region18: #{tpu_custom_call.1} parent=0
    _
  %s4 = ssub.s32 1, %s2
  %s5 = scalar_select 0, %s4, %s2
  $region1: #{tpu_custom_call.1} parent=0
    #allocation2 [shape = 'u8[8192]{0}', space=vmem, size = 0x2000, scoped, tag = 'input window, operand 0, single buffered']
    #allocation3 [shape = 's32[1]{0}', space=sflag, size = 0x4, scoped, tag = 'scoped memory for tpu_custom_call.1']
    #allocation4 [shape = 's32[1]{0}', space=sflag, size = 0x4, scoped, tag = 'scoped memory for tpu_custom_call.1']
    #allocation5 [shape = 'u8[8192]{0}', space=vmem, size = 0x2000, scoped, tag = 'output window, operand 0, single buffered']
    %6 = vsyncpa [#allocation3], 0
    %7 = vsyncpa [#allocation4], 0
    // Predicated region
    $region2: #{tpu_custom_call.1} parent=1 // pred_check
      _
    $region3: #{tpu_custom_call.1} parent=1 // pred_check_branch
      %9 = sbr.rel (0) target = $region5
    $region4: #{tpu_custom_call.1} parent=1 // pred_region
      %11 = vsyncadd [#allocation3], 0
      %s13 = sshll.u32 %s0, 4
      %s14 = int_to_ptr.hbm [resolvable:$true] %s13
      %s15 = sshll.u32 [#allocation2], 4
      %s16 = int_to_ptr.vmem [resolvable:$true] %s15
      %18 = dma.hbm_to_vmem [thread:$0]  %s14, 256, %s16, [#allocation3]
    $region5: #{tpu_custom_call.1} parent=1 // pred_fallthru
      _
    // Predicated region
    $region6: #{tpu_custom_call.1} parent=1 // pred_check
      _
    $region7: #{tpu_custom_call.1} parent=1 // pred_check_branch
      %20 = sbr.rel (0) target = $region9
    $region8: #{tpu_custom_call.1} parent=1 // pred_region
      %22 = dma.done [#allocation3], 256
    $region9: #{tpu_custom_call.1} parent=1 // pred_fallthru
      _
    %v23 = vld [vmem:[#allocation2] sm:$0xff]
    %v24 = vld [vmem:[#allocation2 + $0x8] sm:$0xff]
    %v25 = vmul.f32 %v23, %v23
    %v26 = vmul.f32 %v24, %v24
    %v27 = vmul.f32 %v23, %v25
    %v28 = vmul.f32 %v24, %v26
    %v29 = vmul.f32 %v27, 0.044715
    %v30 = vmul.f32 %v28, 0.044715
    %v31 = vadd.f32 %v23, %v29
    %v32 = vadd.f32 %v24, %v30
    %v33 = vmul.f32 %v31, 0.7978846
    %v34 = vmul.f32 %v32, 0.7978846
    %v35 = vtanh.pop %v33
    %v36 = vtanh.pop %v34
    %v37 = vadd.f32 %v35, 1.0
    %v38 = vadd.f32 %v36, 1.0
    %v39 = vmul.f32 %v37, 0.5
    %v40 = vmul.f32 %v38, 0.5
    %v41 = vmul.f32 %v23, %v39
    %v42 = vmul.f32 %v24, %v40
    %v43 = vadd.f32 %v41, %v23
    %v44 = vadd.f32 %v42, %v24
    %45 = vst [vmem:[#allocation5] sm:$0xff] %v43
    %46 = vst [vmem:[#allocation5 + $0x8] sm:$0xff] %v44
    // Predicated region
    $region10: #{tpu_custom_call.1} parent=1 // pred_check
      _
    $region11: #{tpu_custom_call.1} parent=1 // pred_check_branch
      %48 = sbr.rel (0) target = $region13
    $region12: #{tpu_custom_call.1} parent=1 // pred_region
      %50 = vsyncadd [#allocation4], 0
      %s52 = sshll.u32 [#allocation5], 4
      %s53 = int_to_ptr.vmem [resolvable:$true] %s52
      %s54 = sshll.u32 %s1, 4
      %s55 = int_to_ptr.hbm [resolvable:$true] %s54
      %57 = dma.vmem_to_hbm [thread:$0]  %s53, 256, %s55, [#allocation4]
    $region13: #{tpu_custom_call.1} parent=1 // pred_fallthru
      _
    // Predicated region
    $region14: #{tpu_custom_call.1} parent=1 // pred_check
      _
    $region15: #{tpu_custom_call.1} parent=1 // pred_check_branch
      %59 = sbr.rel (0) target = $region17
    $region16: #{tpu_custom_call.1} parent=1 // pred_region
      %61 = dma.done [#allocation4], 256
    $region17: #{tpu_custom_call.1} parent=1 // pred_fallthru
      _
    %62 = vsyncpa [#allocation3], 1
    %63 = vsyncpa [#allocation4], 1

</llo_original>
